<compile_context>
chip_gen: v7x
topology: tpu7x:2x2x1
jax: 0.10.0
libtpu: 0.0.40
codegen_flags: <defaults>
</compile_context>

<pallas_src>
import functools

import jax
import jax.numpy as jnp
from jax.experimental import pallas as pl
from jax.experimental.pallas import tpu as pltpu

_EPS = 1e-12
_NUM_CORES = 2   # v7x has 2 TensorCores; harmless (masked duplicate / serial) elsewhere.


def _round_up(x, m):
    return ((x + m - 1) // m) * m


def _kl_kernel(t_ref, p_ref, o_ref, *, total_rows, total_cols,
               tiles_per_core, row_pad, col_pad):
    c = pl.program_id(0)   # core / batch-shard axis ("parallel")
    i = pl.program_id(1)   # row-tile axis ("arbitrary", accumulated)
    j = pl.program_id(2)   # col-tile axis ("arbitrary", accumulated)
    tb, tc = t_ref.shape

    # The (1, 8, lanes) output block is resident across (i, j) and doubles as the
    # per-core accumulator; zero it on each core's first step.
    @pl.when(jnp.logical_and(i == 0, j == 0))
    def _init():
        o_ref[...] = jnp.zeros_like(o_ref)

    # Upcast in-register right after the DMA; HBM traffic stays at source dtype.
    t = t_ref[...].astype(jnp.float32)
    p = p_ref[...].astype(jnp.float32)

    # Single transcendental log per element (fused ratio) instead of two logs.
    # TODO(synk): verify EUP push count in the bundle dump; pl.reciprocal(...,
    # approx=True) would shave the exact-recip refinement at ~1e-4 rel. error.
    kl = t * jnp.log((t + _EPS) / (p + _EPS))

    def _accumulate(vals):
        # (tb, tc) -> (8, tc): sum sublane groups of 8 (vreg-grid axis, VALU adds).
        part = vals.reshape(tb // 8, 8, tc).sum(axis=0)
        lanes = o_ref.shape[-1]
        if tc != lanes:
            # (8, tc) -> (8, lanes): sum lane groups of 128 (also pure VALU adds).
            part = part.reshape(8, tc // lanes, lanes).sum(axis=1)
        o_ref[...] += part.reshape(o_ref.shape)

    if not (row_pad or col_pad):
        # No padded/ragged tiles anywhere: no masking machinery emitted at all.
        _accumulate(kl)
    else:
        blk_r = c * tiles_per_core + i
        conds = []
        if row_pad:
            conds.append((blk_r + 1) * tb > total_rows)
        if col_pad:
            conds.append((j + 1) * tc > total_cols)
        ragged = conds[0]
        for extra in conds[1:]:
            ragged = jnp.logical_or(ragged, extra)

        @pl.when(jnp.logical_not(ragged))
        def _interior():              # fast path: interior tiles pay no mask cost
            _accumulate(kl)

        @pl.when(ragged)
        def _edge():                  # runs only on the few boundary tiles
            masked = kl               # NaNs in the pad region are discarded by select
            if row_pad:
                row = jax.lax.broadcasted_iota(jnp.int32, kl.shape, 0) + blk_r * tb
                masked = jnp.where(row < total_rows, masked, 0.0)
            if col_pad:
                col = jax.lax.broadcasted_iota(jnp.int32, kl.shape, 1) + j * tc
                masked = jnp.where(col < total_cols, masked, 0.0)
            _accumulate(masked)


def kl_loss(targets, preds, *, tile_rows=None, tile_cols=None):
    """Batchmean KL(targets || preds) over (B, C) row distributions."""
    assert targets.shape == preds.shape, (targets.shape, preds.shape)
    assert targets.ndim == 2
    B, C = targets.shape
    itemsize = jnp.dtype(targets.dtype).itemsize

    # Generation-aware VMEM budget (v7x has only 64 MiB per TensorCore).
    try:
        info = pltpu.get_tpu_info()
        vmem_cap = int(getattr(info, "vmem_capacity_bytes", 64 * 1024 * 1024))
    except Exception:
        vmem_cap = 64 * 1024 * 1024
    vmem_budget = max(16 << 20, vmem_cap - (12 << 20))
    # ~8 MiB per input tile; 2 inputs x 2 pipeline buffers must fit the budget.
    per_tile_target = min(8 << 20, (vmem_budget - (2 << 20)) // 4)

    row_bytes = C * itemsize

    # ---- column tile (lane dim must be a multiple of 128 or the full extent) ----
    if C % 128 != 0:
        tc = C
        # TODO(synk): vocab-scale C that is not a multiple of 128 would need padded
        # column tiling; a single full-width column block is assumed to fit here.
    elif tile_cols is not None:
        tc = min(C, max(128, (int(tile_cols) // 128) * 128))
    elif 8 * row_bytes <= per_tile_target:
        tc = C
    else:
        tc = max(128, min(C, (per_tile_target // (8 * itemsize)) // 128 * 128))

    # ---- row tile (multiple of 8 sublanes) ----
    if tile_rows is not None:
        tb = max(8, (int(tile_rows) // 8) * 8)
    else:
        tb = max(8, (per_tile_target // max(1, tc * itemsize)) // 8 * 8)
        tb = min(tb, max(8, _round_up((B + 1) // 2, 8)))   # keep both cores busy
    tb = min(tb, _round_up(B, 8))

    nblk_r = pl.cdiv(B, tb)
    nblk_c = pl.cdiv(C, tc)
    tiles_per_core = pl.cdiv(nblk_r, _NUM_CORES)
    grid = (_NUM_CORES, tiles_per_core, nblk_c)

    row_pad = _NUM_CORES * tiles_per_core * tb > B
    col_pad = nblk_c * tc > C
    lanes = 128 if tc % 128 == 0 else tc      # per-core accumulator lane width

    def _in_map(c, i, j):
        # Clamp so padded row blocks on the second core never DMA out of bounds;
        # their contribution is masked to zero inside the kernel.
        return (jnp.minimum(c * tiles_per_core + i, nblk_r - 1), j)

    kernel = functools.partial(
        _kl_kernel, total_rows=B, total_cols=C,
        tiles_per_core=tiles_per_core, row_pad=row_pad, col_pad=col_pad)

    tile_in_bytes = tb * tc * itemsize
    vmem_limit = int(min(vmem_budget,
                         max(16 << 20, 2 * 2 * tile_in_bytes + (2 << 20))))

    partials = pl.pallas_call(
        kernel,
        out_shape=jax.ShapeDtypeStruct((_NUM_CORES, 8, lanes), jnp.float32),
        grid_spec=pltpu.PrefetchScalarGridSpec(
            num_scalar_prefetch=0,
            grid=grid,
            in_specs=[
                pl.BlockSpec((tb, tc), _in_map),
                pl.BlockSpec((tb, tc), _in_map),
            ],
            # One accumulator vreg per core, resident across both reduction axes,
            # written back once per core.
            out_specs=pl.BlockSpec((1, 8, lanes), lambda c, i, j: (c, 0, 0)),
        ),
        compiler_params=pltpu.CompilerParams(
            dimension_semantics=("parallel", "arbitrary", "arbitrary"),
            vmem_limit_bytes=vmem_limit,
        ),
    )(targets, preds)

    # Tiny (2, 8, lanes) cross-core combine + batchmean scale in the wrapper.
    return jnp.sum(partials) / jnp.float32(B)


def _reference_kl(targets, preds):
    t = targets.astype(jnp.float32)
    p = preds.astype(jnp.float32)
    kl = t * (jnp.log(t + _EPS) - jnp.log(p + _EPS))
    return jnp.sum(kl) / targets.shape[0]


if __name__ == "__main__":
    key = jax.random.PRNGKey(0)
    k1, k2, k3, k4 = jax.random.split(key, 4)

    # Case 1: B not a multiple of the row tile (exercises ragged-row masking and
    # the multi-step per-core accumulator).
    B, C = 30, 256
    targets = jax.nn.softmax(jax.random.normal(k1, (B, C), dtype=jnp.float32), axis=-1)
    preds = jax.nn.softmax(jax.random.normal(k2, (B, C), dtype=jnp.float32), axis=-1)
    ref = _reference_kl(targets, preds)

    loss_tiled = kl_loss(targets, preds, tile_rows=8)
    jax.block_until_ready(loss_tiled)
    assert jnp.allclose(loss_tiled, ref, rtol=1e-5, atol=1e-6), (loss_tiled, ref)

    # Auto-sized tiles (one tile per core at this problem size).
    loss_auto = kl_loss(targets, preds)
    jax.block_until_ready(loss_auto)
    assert jnp.allclose(loss_auto, ref, rtol=1e-5, atol=1e-6), (loss_auto, ref)

    # Case 2: bf16 ingestion with in-kernel upcast (halves HBM read traffic).
    t_bf16 = targets.astype(jnp.bfloat16)
    p_bf16 = preds.astype(jnp.bfloat16)
    loss_bf16 = kl_loss(t_bf16, p_bf16, tile_rows=8)
    jax.block_until_ready(loss_bf16)
    ref_bf16 = _reference_kl(t_bf16, p_bf16)
    assert jnp.allclose(loss_bf16, ref_bf16, rtol=5e-3, atol=1e-4), (loss_bf16, ref_bf16)

    # Case 3: column tiling with a ragged last column block (2-D grid path).
    B2, C2 = 16, 384
    t2 = jax.nn.softmax(jax.random.normal(k3, (B2, C2), dtype=jnp.float32), axis=-1)
    p2 = jax.nn.softmax(jax.random.normal(k4, (B2, C2), dtype=jnp.float32), axis=-1)
    ref2 = _reference_kl(t2, p2)
    loss2 = kl_loss(t2, p2, tile_rows=8, tile_cols=256)
    jax.block_until_ready(loss2)
    assert jnp.allclose(loss2, ref2, rtol=1e-5, atol=1e-6), (loss2, ref2)

    print("KERNEL_OK")
</pallas_src>

<mosaic_0001>
module attributes {stable_mosaic.version = 11 : i64} {
  func.func @_kl_kernel(%arg0: i32, %arg1: i32, %arg2: i32, %arg3: memref<8x256xf32, #tpu.memory_space<vmem>>, %arg4: memref<8x256xf32, #tpu.memory_space<vmem>>, %arg5: memref<1x8x128xf32, #tpu.memory_space<vmem>>) attributes {dimension_semantics = [#tpu.dimension_semantics<parallel>, #tpu.dimension_semantics<arbitrary>, #tpu.dimension_semantics<arbitrary>], iteration_bounds = array<i64: 2, 2, 1>, scalar_prefetch = 0 : i64, scratch_operands = 0 : i64, tpu.core_type = #tpu.core_type<tc>, window_params = [{transform_indices = @transform_0, window_bounds = array<i64: 8, 256>}, {transform_indices = @transform_1, window_bounds = array<i64: 8, 256>}, {transform_indices = @transform_2, window_bounds = array<i64: 1, 8, 128>}]} {
    %c0_i32 = arith.constant 0 : i32
    %0 = arith.cmpi eq, %arg1, %c0_i32 : i32
    %c0_i32_0 = arith.constant 0 : i32
    %1 = arith.cmpi eq, %arg2, %c0_i32_0 : i32
    %2 = arith.andi %0, %1 : i1
    %3 = arith.extui %2 : i1 to i32
    %c0_i32_1 = arith.constant 0 : i32
    %4 = arith.cmpi ne, %3, %c0_i32_1 : i32
    scf.if %4 {
      %cst_8 = arith.constant 0.000000e+00 : f32
      %24 = vector.broadcast %cst_8 : f32 to vector<1x8x128xf32>
      %c0_9 = arith.constant 0 : index
      %c0_10 = arith.constant 0 : index
      %c0_11 = arith.constant 0 : index
      %25 = vector.load %arg5[%c0_9, %c0_10, %c0_11] : memref<1x8x128xf32, #tpu.memory_space<vmem>>, vector<1x8x128xf32>
      tpu.vector_store %arg5[%c0_9, %c0_10, %c0_11], %24 {strides = array<i32>} : memref<1x8x128xf32, #tpu.memory_space<vmem>>, vector<1x8x128xf32>,
    } else {
    }
    %c0 = arith.constant 0 : index
    %c0_2 = arith.constant 0 : index
    %5 = vector.load %arg3[%c0, %c0_2] : memref<8x256xf32, #tpu.memory_space<vmem>>, vector<8x256xf32>
    %c0_3 = arith.constant 0 : index
    %c0_4 = arith.constant 0 : index
    %6 = vector.load %arg4[%c0_3, %c0_4] : memref<8x256xf32, #tpu.memory_space<vmem>>, vector<8x256xf32>
    %cst = arith.constant 9.99999996E-13 : f32
    %7 = vector.broadcast %cst : f32 to vector<8x256xf32>
    %8 = arith.addf %5, %7 : vector<8x256xf32>
    %cst_5 = arith.constant 9.99999996E-13 : f32
    %9 = vector.broadcast %cst_5 : f32 to vector<8x256xf32>
    %10 = arith.addf %6, %9 : vector<8x256xf32>
    %11 = arith.divf %8, %10 : vector<8x256xf32>
    %12 = math.log %11 : vector<8x256xf32>
    %13 = arith.mulf %5, %12 : vector<8x256xf32>
    %c2_i32 = arith.constant 2 : i32
    %14 = arith.muli %arg0, %c2_i32 : i32
    %15 = arith.addi %14, %arg1 : i32
    %c1_i32 = arith.constant 1 : i32
    %16 = arith.addi %15, %c1_i32 : i32
    %c8_i32 = arith.constant 8 : i32
    %17 = arith.muli %16, %c8_i32 : i32
    %c30_i32 = arith.constant 30 : i32
    %18 = arith.cmpi sgt, %17, %c30_i32 : i32
    %true = arith.constant true
    %19 = arith.xori %18, %true : i1
    %20 = arith.extui %19 : i1 to i32
    %c0_i32_6 = arith.constant 0 : i32
    %21 = arith.cmpi ne, %20, %c0_i32_6 : i32
    scf.if %21 {
      %24 = vector.shape_cast %13 : vector<8x256xf32> to vector<1x8x256xf32>
      %cst_8 = arith.constant dense<0.000000e+00> : vector<8x256xf32>
      %25 = vector.multi_reduction <add>, %24, %cst_8 [0] : vector<1x8x256xf32> to vector<8x256xf32>
      %26 = vector.shape_cast %25 : vector<8x256xf32> to vector<8x2x128xf32>
      %cst_9 = arith.constant dense<0.000000e+00> : vector<8x128xf32>
      %27 = vector.multi_reduction <add>, %26, %cst_9 [1] : vector<8x2x128xf32> to vector<8x128xf32>
      %c0_10 = arith.constant 0 : index
      %c0_11 = arith.constant 0 : index
      %c0_12 = arith.constant 0 : index
      %28 = vector.load %arg5[%c0_10, %c0_11, %c0_12] : memref<1x8x128xf32, #tpu.memory_space<vmem>>, vector<1x8x128xf32>
      %29 = vector.shape_cast %27 : vector<8x128xf32> to vector<1x8x128xf32>
      %30 = arith.addf %28, %29 : vector<1x8x128xf32>
      %c0_13 = arith.constant 0 : index
      %c0_14 = arith.constant 0 : index
      %c0_15 = arith.constant 0 : index
      %31 = vector.load %arg5[%c0_13, %c0_14, %c0_15] : memref<1x8x128xf32, #tpu.memory_space<vmem>>, vector<1x8x128xf32>
      tpu.vector_store %arg5[%c0_13, %c0_14, %c0_15], %30 {strides = array<i32>} : memref<1x8x128xf32, #tpu.memory_space<vmem>>, vector<1x8x128xf32>,
    } else {
    }
    %22 = arith.extui %18 : i1 to i32
    %c0_i32_7 = arith.constant 0 : i32
    %23 = arith.cmpi ne, %22, %c0_i32_7 : i32
    scf.if %23 {
      %24 = tpu.iota {dimensions = array<i32: 0>} : vector<8x256xi32>
      %c8_i32_8 = arith.constant 8 : i32
      %25 = arith.muli %15, %c8_i32_8 : i32
      %26 = vector.broadcast %25 : i32 to vector<8x256xi32>
      %27 = arith.addi %24, %26 : vector<8x256xi32>
      %c30_i32_9 = arith.constant 30 : i32
      %28 = vector.broadcast %c30_i32_9 : i32 to vector<8x256xi32>
      %29 = arith.cmpi slt, %27, %28 : vector<8x256xi32>
      %cst_10 = arith.constant 0.000000e+00 : f32
      %30 = vector.broadcast %cst_10 : f32 to vector<8x256xf32>
      %31 = arith.select %29, %13, %30 : vector<8x256xi1>, vector<8x256xf32>
      %32 = vector.shape_cast %31 : vector<8x256xf32> to vector<1x8x256xf32>
      %cst_11 = arith.constant dense<0.000000e+00> : vector<8x256xf32>
      %33 = vector.multi_reduction <add>, %32, %cst_11 [0] : vector<1x8x256xf32> to vector<8x256xf32>
      %34 = vector.shape_cast %33 : vector<8x256xf32> to vector<8x2x128xf32>
      %cst_12 = arith.constant dense<0.000000e+00> : vector<8x128xf32>
      %35 = vector.multi_reduction <add>, %34, %cst_12 [1] : vector<8x2x128xf32> to vector<8x128xf32>
      %c0_13 = arith.constant 0 : index
      %c0_14 = arith.constant 0 : index
      %c0_15 = arith.constant 0 : index
      %36 = vector.load %arg5[%c0_13, %c0_14, %c0_15] : memref<1x8x128xf32, #tpu.memory_space<vmem>>, vector<1x8x128xf32>
      %37 = vector.shape_cast %35 : vector<8x128xf32> to vector<1x8x128xf32>
      %38 = arith.addf %36, %37 : vector<1x8x128xf32>
      %c0_16 = arith.constant 0 : index
      %c0_17 = arith.constant 0 : index
      %c0_18 = arith.constant 0 : index
      %39 = vector.load %arg5[%c0_16, %c0_17, %c0_18] : memref<1x8x128xf32, #tpu.memory_space<vmem>>, vector<1x8x128xf32>
      tpu.vector_store %arg5[%c0_16, %c0_17, %c0_18], %38 {strides = array<i32>} : memref<1x8x128xf32, #tpu.memory_space<vmem>>, vector<1x8x128xf32>,
    } else {
    }
    return
  }
  func.func @transform_0(%arg0: i32, %arg1: i32, %arg2: i32) -> (i32, i32) {
    %c2_i32 = arith.constant 2 : i32
    %0 = arith.muli %arg0, %c2_i32 : i32
    %1 = arith.addi %0, %arg1 : i32
    %c3_i32 = arith.constant 3 : i32
    %2 = arith.minsi %1, %c3_i32 : i32
    %c0_i32 = arith.constant 0 : i32
    return %2, %arg2 : i32, i32
  }
  func.func @transform_1(%arg0: i32, %arg1: i32, %arg2: i32) -> (i32, i32) {
    %c2_i32 = arith.constant 2 : i32
    %0 = arith.muli %arg0, %c2_i32 : i32
    %1 = arith.addi %0, %arg1 : i32
    %c3_i32 = arith.constant 3 : i32
    %2 = arith.minsi %1, %c3_i32 : i32
    %c0_i32 = arith.constant 0 : i32
    return %2, %arg2 : i32, i32
  }
  func.func @transform_2(%arg0: i32, %arg1: i32, %arg2: i32) -> (i32, i32, i32) {
    %c0_i32 = arith.constant 0 : i32
    %c0_i32_0 = arith.constant 0 : i32
    %c0_i32_1 = arith.constant 0 : i32
    return %arg0, %c0_i32, %c0_i32_0 : i32, i32, i32
  }
}

</mosaic_0001>

<llo_original>
// kernel: tpu_custom_call.1
$region0: #{tpu_custom_call.1}
  #allocation0 [shape = 'u32[]', space=smem, size = 0x4, offset = 0x4, fixed_abs, tag = 'smem constant byte address 0x4 - core index']
  #allocation1 [shape = 'u32[144,128]{1,0:T(1,128)}', space=vmem, size = 0x12000, scoped, tag = 'internal scratch']
  %s0 = inlined_call_operand.hbm [shape: f32[30,256], index: 0, kind: input, shape index: {}]
  %s1 = inlined_call_operand.hbm [shape: f32[30,256], index: 1, kind: input, shape index: {}]
  %s2 = inlined_call_operand.hbm [shape: f32[2,8,128], index: 2, kind: output, shape index: {}]
  %s3 = sld [smem:[#allocation0]]
  $region61: #{tpu_custom_call.1} parent=0
    _
  %s5 = ssub.s32 1, %s3
  %s6 = scalar_select 0, %s5, %s3
  $region1: #{tpu_custom_call.1} parent=0
    #allocation2 [shape = 'u8[16384]{0}', space=vmem, size = 0x4000, scoped, tag = 'input window, operand 0']
    #allocation3 [shape = 's32[2]{0}', space=sflag, size = 0x8, scoped, tag = 'scoped memory for tpu_custom_call.1']
    #allocation4 [shape = 's32[2]{0}', space=sflag, size = 0x8, scoped, tag = 'scoped memory for tpu_custom_call.1']
    #allocation5 [shape = 'u8[16384]{0}', space=vmem, size = 0x4000, scoped, tag = 'input window, operand 1']
    #allocation6 [shape = 's32[2]{0}', space=sflag, size = 0x8, scoped, tag = 'scoped memory for tpu_custom_call.1']
    #allocation7 [shape = 'u8[8192]{0}', space=vmem, size = 0x2000, scoped, tag = 'output window, operand 0']
    %7 = vsyncpa [#allocation3], 0
    %s8 = scalar_lea.sflag [#allocation3], 1
    %9 = vsyncpa %s8, 0
    %10 = vsyncpa [#allocation6], 0
    %s11 = scalar_lea.sflag [#allocation6], 1
    %12 = vsyncpa %s11, 0
    %13 = vsyncpa [#allocation4], 0
    %s14 = scalar_lea.sflag [#allocation4], 1
    %15 = vsyncpa %s14, 0
    loop: start=0, step=1, limit=6
    $region2: #{tpu_custom_call.1} parent=1 // loop_pre_header
      _
    $region3: #{tpu_custom_call.1} parent=1 // loop_header
      %s17 = sphi 0, %s21
      %p18 = scmp.ge.s32.totalorder %s17, 6
      %s24 = sphi 0, %s43
      %s25 = sphi 0, %s39
      %s26 = sphi 0, %s35
      %s27 = sphi 0, %s24
      %s28 = sphi 0, %s25
      %s29 = sphi 0, %s26
      %s30 = sphi 0, %s27
      %s31 = sphi 0, %s28
      %s32 = sphi 0, %s29
      %s56 = sphi 0, %s58
      %s59 = sphi 0, %s56
      %s60 = sphi 0, %s59
      %s76 = sphi 0, %s60
      %s92 = sphi 0, %s94
      %s95 = sphi 0, %s92
      %s96 = sphi 0, %s95
      %s112 = sphi 0, %s96
      %s118 = sphi 0, %s120
      %s121 = sphi 0, %s118
      %s122 = sphi 0, %s121
      %s138 = sphi 0, %s122
    $region4: #{tpu_custom_call.1} parent=1 // loop_header_branch
      %20 = sbr.rel (%p18) target = $region8
    $region5: #{tpu_custom_call.1} parent=1 // loop_body
      %s22 = ssub.s32 %s17, 1
      %s23 = ssub.s32 %s17, 2
      %s33 = sadd.s32 1, %s26
      %p34 = scmp.ge.s32.totalorder %s33, 1
      %s35 = scalar_select %p34, 0, %s33
      %s36 = sadd.s32 1, %s25
      %s37 = scalar_select %p34, %s36, %s25
      %p38 = scmp.ge.s32.totalorder %s37, 2
      %s39 = scalar_select %p38, 0, %s37
      %s40 = sadd.s32 1, %s24
      %s41 = scalar_select %p38, %s40, %s24
      %p42 = scmp.ge.s32.totalorder %s41, 2
      %s43 = scalar_select %p42, 0, %s41
      %s44 = smul.u32 %s24, 2
      %s45 = sadd.s32 %s44, %s25
      %p46 = scmp.lt.s32.totalorder %s45, 3
      %s47 = scalar_select %p46, %s45, 3
      %s48 = smul.u32 %s43, 2
      %s49 = sadd.s32 %s48, %s39
      %p50 = scmp.lt.s32.totalorder %s49, 3
      %s51 = scalar_select %p50, %s49, 3
      %s52 = ssub.s32 %s47, %s51
      %s53 = ssub.s32 %s26, %s35
      %s54 = sor.u32 %s52, %s53
      %p55 = scmp.eq.s32.totalorder %s54, 0
      %s57 = sadd.s32 %s56, 1
      %s58 = scalar_select %p55, %s56, %s57
      %p61 = pneg %p55
      %p62 = scmp.eq.s32.totalorder %s17, 3
      %p63 = por %p61, %p62
      %p64 = scmp.ne.s32.totalorder %s56, %s59
      %p65 = scmp.eq.s32.totalorder %s17, 0
      %p66 = por %p64, %p65
      %p67 = scmp.ne.s32.totalorder %s56, %s59
      %p68 = scmp.eq.s32.totalorder %s22, 3
      %p69 = por %p67, %p68
      %p70 = scmp.ne.s32.totalorder %s59, %s60
      %p71 = scmp.eq.s32.totalorder %s22, 0
      %p72 = por %p70, %p71
      %p73 = scmp.ne.s32.totalorder %s59, %s60
      %p74 = scmp.eq.s32.totalorder %s23, 3
      %p75 = por %p73, %p74
      %p77 = scmp.ne.s32.totalorder %s60, %s76
      %p78 = scmp.eq.s32.totalorder %s23, 0
      %p79 = por %p77, %p78
      %s80 = smul.u32 %s24, 2
      %s81 = sadd.s32 %s80, %s25
      %p82 = scmp.lt.s32.totalorder %s81, 3
      %s83 = scalar_select %p82, %s81, 3
      %s84 = smul.u32 %s43, 2
      %s85 = sadd.s32 %s84, %s39
      %p86 = scmp.lt.s32.totalorder %s85, 3
      %s87 = scalar_select %p86, %s85, 3
      %s88 = ssub.s32 %s83, %s87
      %s89 = ssub.s32 %s26, %s35
      %s90 = sor.u32 %s88, %s89
      %p91 = scmp.eq.s32.totalorder %s90, 0
      %s93 = sadd.s32 %s92, 1
      %s94 = scalar_select %p91, %s92, %s93
      %p97 = pneg %p91
      %p98 = scmp.eq.s32.totalorder %s17, 3
      %p99 = por %p97, %p98
      %p100 = scmp.ne.s32.totalorder %s92, %s95
      %p101 = scmp.eq.s32.totalorder %s17, 0
      %p102 = por %p100, %p101
      %p103 = scmp.ne.s32.totalorder %s92, %s95
      %p104 = scmp.eq.s32.totalorder %s22, 3
      %p105 = por %p103, %p104
      %p106 = scmp.ne.s32.totalorder %s95, %s96
      %p107 = scmp.eq.s32.totalorder %s22, 0
      %p108 = por %p106, %p107
      %p109 = scmp.ne.s32.totalorder %s95, %s96
      %p110 = scmp.eq.s32.totalorder %s23, 3
      %p111 = por %p109, %p110
      %p113 = scmp.ne.s32.totalorder %s96, %s112
      %p114 = scmp.eq.s32.totalorder %s23, 0
      %p115 = por %p113, %p114
      %s116 = ssub.s32 %s24, %s43
      %p117 = scmp.eq.s32.totalorder %s116, 0
      %s119 = sadd.s32 %s118, 1
      %s120 = scalar_select %p117, %s118, %s119
      %p123 = pneg %p117
      %p124 = scmp.eq.s32.totalorder %s17, 3
      %p125 = por %p123, %p124
      %p126 = scmp.ne.s32.totalorder %s118, %s121
      %p127 = scmp.eq.s32.totalorder %s17, 0
      %p128 = por %p126, %p127
      %p129 = scmp.ne.s32.totalorder %s118, %s121
      %p130 = scmp.eq.s32.totalorder %s22, 3
      %p131 = por %p129, %p130
      %p132 = scmp.ne.s32.totalorder %s121, %s122
      %p133 = scmp.eq.s32.totalorder %s22, 0
      %p134 = por %p132, %p133
      %p135 = scmp.ne.s32.totalorder %s121, %s122
      %p136 = scmp.eq.s32.totalorder %s23, 3
      %p137 = por %p135, %p136
      %p139 = scmp.ne.s32.totalorder %s122, %s138
      %p140 = scmp.eq.s32.totalorder %s23, 0
      %p141 = por %p139, %p140
      %p142 = scmp.le.s32.totalorder 1, %s17
      %p143 = scmp.lt.s32.totalorder %s17, 5
      %p144 = pnand %p142, %p143
      %p145 = pneg %p144
      // Predicated region
      $region9: #{tpu_custom_call.1} parent=5 // pred_check
        _
      $region10: #{tpu_custom_call.1} parent=5 // pred_check_branch
        %147 = sbr.rel (%p144) target = $region12
      $region11: #{tpu_custom_call.1} parent=5 // pred_region
        %s148 = ssub.s32 %s17, 1
      $region12: #{tpu_custom_call.1} parent=5 // pred_fallthru
        _
      %p149 = scmp.lt.s32.totalorder %s17, 4
      // Predicated region
      $region13: #{tpu_custom_call.1} parent=5 // pred_check
        %p150 = pneg %p149
      $region14: #{tpu_custom_call.1} parent=5 // pred_check_branch
        %152 = sbr.rel (%p150) target = $region16
      $region15: #{tpu_custom_call.1} parent=5 // pred_region
        // Predicated region
        $region17: #{tpu_custom_call.1} parent=15 // pred_check
          %p153 = pneg %p66
        $region18: #{tpu_custom_call.1} parent=15 // pred_check_branch
          %155 = sbr.rel (%p153) target = $region20
        $region19: #{tpu_custom_call.1} parent=15 // pred_region
          %s156 = sand.u32 %s56, 1
          %s157 = scalar_lea.sflag [#allocation3], %s156
          %s158 = sand.u32 %s56, 1
          %s159 = smul.addr %s158, 16
          %s160 = scalar_lea.vmem [#allocation2], %s159
          %s161 = smul.u32 %s24, 2
          %s162 = sadd.s32 %s161, %s25
          %p163 = scmp.lt.s32.totalorder %s162, 3
          %s164 = scalar_select %p163, %s162, 3
          %s165 = smul.u32 2, %s26
          %s167 = ssub.s32 256, 256
          %168 = vsyncadd %s157, %s167
          %s169 = smul.addr %s164, 2
          %s170 = sadd.s32 %s165, %s169
          %s171 = smul.addr %s170, 128
          %s172 = scalar_lea.hbm %s0, %s171
          %s174 = sshll.u32 %s160, 4
          %s175 = int_to_ptr.vmem [resolvable:$true] %s174
          %177 = dma.hbm_to_vmem [thread:$0]  %s172, 256, %s175, %s157
        $region20: #{tpu_custom_call.1} parent=15 // pred_fallthru
          _
        // Predicated region
        $region21: #{tpu_custom_call.1} parent=15 // pred_check
          %p178 = pneg %p102
        $region22: #{tpu_custom_call.1} parent=15 // pred_check_branch
          %180 = sbr.rel (%p178) target = $region24
        $region23: #{tpu_custom_call.1} parent=15 // pred_region
          %s181 = sand.u32 %s92, 1
          %s182 = scalar_lea.sflag [#allocation6], %s181
          %s183 = sand.u32 %s92, 1
          %s184 = smul.addr %s183, 16
          %s185 = scalar_lea.vmem [#allocation5], %s184
          %s186 = smul.u32 %s24, 2
          %s187 = sadd.s32 %s186, %s25
          %p188 = scmp.lt.s32.totalorder %s187, 3
          %s189 = scalar_select %p188, %s187, 3
          %s190 = smul.u32 2, %s26
          %s192 = ssub.s32 256, 256
          %193 = vsyncadd %s182, %s192
          %s194 = smul.addr %s189, 2
          %s195 = sadd.s32 %s190, %s194
          %s196 = smul.addr %s195, 128
          %s197 = scalar_lea.hbm %s1, %s196
          %s199 = sshll.u32 %s185, 4
          %s200 = int_to_ptr.vmem [resolvable:$true] %s199
          %202 = dma.hbm_to_vmem [thread:$0]  %s197, 256, %s200, %s182
        $region24: #{tpu_custom_call.1} parent=15 // pred_fallthru
          _
      $region16: #{tpu_custom_call.1} parent=5 // pred_fallthru
        _
      %p203 = scmp.le.s32.totalorder 1, %s17
      %p204 = scmp.lt.s32.totalorder %s17, 5
      %p205 = pnand %p203, %p204
      %p206 = pneg %p205
      // Predicated region
      $region25: #{tpu_custom_call.1} parent=5 // pred_check
        _
      $region26: #{tpu_custom_call.1} parent=5 // pred_check_branch
        %208 = sbr.rel (%p205) target = $region28
      $region27: #{tpu_custom_call.1} parent=5 // pred_region
        %s209 = ssub.s32 %s17, 1
        %s210 = sand.u32 %s59, 1
        %s211 = scalar_lea.sflag [#allocation3], %s210
        %s212 = sand.u32 %s59, 1
        %s213 = smul.addr %s212, 16
        %s214 = scalar_lea.vmem [#allocation2], %s213
        // Predicated region
        $region29: #{tpu_custom_call.1} parent=27 // pred_check
          %p215 = pneg %p72
        $region30: #{tpu_custom_call.1} parent=27 // pred_check_branch
          %217 = sbr.rel (%p215) target = $region32
        $region31: #{tpu_custom_call.1} parent=27 // pred_region
          %218 = dma.done %s211, 256
        $region32: #{tpu_custom_call.1} parent=27 // pred_fallthru
          _
        %s219 = sand.u32 %s95, 1
        %s220 = scalar_lea.sflag [#allocation6], %s219
        %s221 = sand.u32 %s95, 1
        %s222 = smul.addr %s221, 16
        %s223 = scalar_lea.vmem [#allocation5], %s222
        // Predicated region
        $region33: #{tpu_custom_call.1} parent=27 // pred_check
          %p224 = pneg %p108
        $region34: #{tpu_custom_call.1} parent=27 // pred_check_branch
          %226 = sbr.rel (%p224) target = $region36
        $region35: #{tpu_custom_call.1} parent=27 // pred_region
          %227 = dma.done %s220, 256
        $region36: #{tpu_custom_call.1} parent=27 // pred_fallthru
          _
        %s228 = sand.u32 %s59, 1
        %s229 = scalar_lea.sflag [#allocation3], %s228
        %s230 = sand.u32 %s59, 1
        %s231 = smul.addr %s230, 16
        %s232 = scalar_lea.vmem [#allocation2], %s231
        %p233 = pneg %p72
        %p234 = pneg %p69
        %s235 = sand.u32 %s95, 1
        %s236 = scalar_lea.sflag [#allocation6], %s235
        %s237 = sand.u32 %s95, 1
        %s238 = smul.addr %s237, 16
        %s239 = scalar_lea.vmem [#allocation5], %s238
        %p240 = pneg %p108
        %p241 = pneg %p105
        %p242 = pneg %p134
        %p243 = pneg %p131
        %s244 = sand.u32 %s121, 1
        %s245 = scalar_lea.sflag [#allocation4], %s244
        %s246 = sand.u32 %s121, 1
        %s247 = smul.addr %s246, 8
        %s248 = scalar_lea.vmem [#allocation7], %s247
        %s249 = smul.u32 %s27, 2
        %s250 = sadd.s32 %s249, %s28
        %p251 = scmp.lt.s32.totalorder %s250, 3
        %s252 = scalar_select %p251, %s250, 3
        %s253 = smul.u32 2, %s29
        %s254 = smul.u32 %s27, 2
        %s255 = sadd.s32 %s254, %s28
        %p256 = scmp.lt.s32.totalorder %s255, 3
        %s257 = scalar_select %p256, %s255, 3
        %s258 = smul.u32 2, %s29
        %p259 = scmp.eq.s32.totalorder %s28, 0
        %p260 = scmp.eq.s32.totalorder %s29, 0
        %p261 = pnand %p259, %p260
        %p262 = pneg %p261
        // Predicated region
        $region37: #{tpu_custom_call.1} parent=27 // pred_check
          _
        $region38: #{tpu_custom_call.1} parent=27 // pred_check_branch
          %264 = sbr.rel (%p261) target = $region40
        $region39: #{tpu_custom_call.1} parent=27 // pred_region
          %265 = vst [vmem:[%s248] sm:$0xff] 0.0
        $region40: #{tpu_custom_call.1} parent=27 // pred_fallthru
          _
        %v266 = vld [vmem:[%s214] sm:$0xff]
        %v267 = vld [vmem:[%s214 + $0x8] sm:$0xff]
        %v268 = vld [vmem:[%s223] sm:$0xff]
        %v269 = vld [vmem:[%s223 + $0x8] sm:$0xff]
        %v270 = vadd.f32 %v266, 1e-12
        %v271 = vadd.f32 %v267, 1e-12
        %v272 = vadd.f32 %v268, 1e-12
        %v273 = vadd.f32 %v269, 1e-12
        %v274 = vrcp.pop %v272
        %v275 = vmul.f32 %v270, %v274
        %v276 = vrcp.pop %v273
        %v277 = vmul.f32 %v271, %v276
        %v278 = vlog2.pop %v275
        %v279 = vmul.f32 %v278, 0.6931472
        %v280 = vlog2.pop %v277
        %v281 = vmul.f32 %v280, 0.6931472
        %v282 = vmul.f32 %v266, %v279
        %v283 = vmul.f32 %v267, %v281
        %s284 = smul.u32 %s27, 2
        %s285 = sadd.s32 %s284, %s28
        %s286 = sadd.s32 %s285, 1
        %s287 = smul.u32 %s286, 8
        %p288 = scmp.gt.s32.totalorder %s287, 30
        %p289 = scmp.le.s32.totalorder %s287, 30
        // Predicated region
        $region41: #{tpu_custom_call.1} parent=27 // pred_check
          %p290 = pneg %p289
        $region42: #{tpu_custom_call.1} parent=27 // pred_check_branch
          %292 = sbr.rel (%p290) target = $region44
        $region43: #{tpu_custom_call.1} parent=27 // pred_region
          %v293 = vadd.f32 %v282, 0.0
          %v294 = vadd.f32 %v283, 0.0
          %v295 = vcombine.high %v293, 0.0
          %v297 = vunpack.c.l.s4 1983009808
          %v298 = vunpack.c.0.s8 %v297
          %v299 = vlaneseq
          %v300 = vshrl.u32 %v299, 7
          %v301 = vsub.s32 %v298, %v300
          %v302 = vrot.slane %v293, %v301
          %v304 = vunpack.c.l.s4 1983009808
          %v305 = vunpack.c.0.s8 %v304
          %v306 = vlaneseq
          %v307 = vshrl.u32 %v306, 7
          %v308 = vsub.s32 %v305, %v307
          %v309 = vrot.slane %v295, %v308
          %v310 = vcombine.high %v294, 0.0
          %v312 = vunpack.c.l.s4 1983009808
          %v313 = vunpack.c.0.s8 %v312
          %v314 = vlaneseq
          %v315 = vshrl.u32 %v314, 7
          %v316 = vsub.s32 %v313, %v315
          %v317 = vrot.slane %v294, %v316
          %v319 = vunpack.c.l.s4 1983009808
          %v320 = vunpack.c.0.s8 %v319
          %v321 = vlaneseq
          %v322 = vshrl.u32 %v321, 7
          %v323 = vsub.s32 %v320, %v322
          %v324 = vrot.slane %v310, %v323
          %v325 = vcombine.low %v302, %v317
          %v326 = vcombine.high %v302, %v317
          %v328 = vunpack.c.l.s4 1934713408
          %v329 = vunpack.c.0.s8 %v328
          %v330 = vlaneseq
          %v331 = vshrl.u32 %v330, 7
          %v332 = vsub.s32 %v329, %v331
          %v333 = vrot.slane %v325, %v332
          %v335 = vunpack.c.l.s4 1934713408
          %v336 = vunpack.c.0.s8 %v335
          %v337 = vlaneseq
          %v338 = vshrl.u32 %v337, 7
          %v339 = vsub.s32 %v336, %v338
          %v340 = vrot.slane %v326, %v339
          %v341 = vcombine.low %v309, %v324
          %v342 = vcombine.high %v309, %v324
          %v344 = vunpack.c.l.s4 1934713408
          %v345 = vunpack.c.0.s8 %v344
          %v346 = vlaneseq
          %v347 = vshrl.u32 %v346, 7
          %v348 = vsub.s32 %v345, %v347
          %v349 = vrot.slane %v341, %v348
          %v351 = vunpack.c.l.s4 1934713408
          %v352 = vunpack.c.0.s8 %v351
          %v353 = vlaneseq
          %v354 = vshrl.u32 %v353, 7
          %v355 = vsub.s32 %v352, %v354
          %v356 = vrot.slane %v342, %v355
          %v357 = vcombine.high %v333, 0.0
          %v358 = vcombine.high %v340, 0.0
          %v359 = vcombine.high %v349, 0.0
          %v360 = vcombine.high %v356, 0.0
          %vm361 = vcmask 1041408
          %v362 = vsel %vm361, %v333, 0.0
          %v363 = vrot.slane %v362, 4
          %v364 = vadd.f32 %v362, %v363
          %v365 = vrot.slane %v364, 2
          %v366 = vadd.f32 %v364, %v365
          %v367 = vrot.slane %v366, 1
          %v368 = vadd.f32 %v366, %v367
          %v369 = vsel %vm361, %v357, 0.0
          %v370 = vrot.slane %v369, 4
          %v371 = vadd.f32 %v369, %v370
          %v372 = vrot.slane %v371, 2
          %v373 = vadd.f32 %v371, %v372
          %v374 = vrot.slane %v373, 1
          %v375 = vadd.f32 %v373, %v374
          %v376 = vsel %vm361, %v340, 0.0
          %v377 = vrot.slane %v376, 4
          %v378 = vadd.f32 %v376, %v377
          %v379 = vrot.slane %v378, 2
          %v380 = vadd.f32 %v378, %v379
          %v381 = vrot.slane %v380, 1
          %v382 = vadd.f32 %v380, %v381
          %v383 = vsel %vm361, %v358, 0.0
          %v384 = vrot.slane %v383, 4
          %v385 = vadd.f32 %v383, %v384
          %v386 = vrot.slane %v385, 2
          %v387 = vadd.f32 %v385, %v386
          %v388 = vrot.slane %v387, 1
          %v389 = vadd.f32 %v387, %v388
          %v390 = vsel %vm361, %v349, 0.0
          %v391 = vrot.slane %v390, 4
          %v392 = vadd.f32 %v390, %v391
          %v393 = vrot.slane %v392, 2
          %v394 = vadd.f32 %v392, %v393
          %v395 = vrot.slane %v394, 1
          %v396 = vadd.f32 %v394, %v395
          %v397 = vsel %vm361, %v359, 0.0
          %v398 = vrot.slane %v397, 4
          %v399 = vadd.f32 %v397, %v398
          %v400 = vrot.slane %v399, 2
          %v401 = vadd.f32 %v399, %v400
          %v402 = vrot.slane %v401, 1
          %v403 = vadd.f32 %v401, %v402
          %v404 = vsel %vm361, %v356, 0.0
          %v405 = vrot.slane %v404, 4
          %v406 = vadd.f32 %v404, %v405
          %v407 = vrot.slane %v406, 2
          %v408 = vadd.f32 %v406, %v407
          %v409 = vrot.slane %v408, 1
          %v410 = vadd.f32 %v408, %v409
          %v411 = vsel %vm361, %v360, 0.0
          %v412 = vrot.slane %v411, 4
          %v413 = vadd.f32 %v411, %v412
          %v414 = vrot.slane %v413, 2
          %v415 = vadd.f32 %v413, %v414
          %v416 = vrot.slane %v415, 1
          %v417 = vadd.f32 %v415, %v416
          %v418 = vld [vmem:[%s248] sm:$0xff]
          %vm427 = vcmask 1041409
          %v428 = vsel %vm427, %v375, %v368
          %vm429 = vcmask 1042434
          %v430 = vsel %vm429, %v382, %v428
          %vm431 = vcmask 1043459
          %v432 = vsel %vm431, %v389, %v430
          %vm433 = vcmask 1044484
          %v434 = vsel %vm433, %v396, %v432
          %vm435 = vcmask 1045509
          %v436 = vsel %vm435, %v403, %v434
          %vm437 = vcmask 1046534
          %v438 = vsel %vm437, %v410, %v436
          %vm439 = vcmask 1047559
          %v440 = vsel %vm439, %v417, %v438
          %v442 = vadd.f32 %v418, %v440
          %443 = vst [vmem:[%s248] sm:$0xff] %v442
        $region44: #{tpu_custom_call.1} parent=27 // pred_fallthru
          _
        // Predicated region
        $region45: #{tpu_custom_call.1} parent=27 // pred_check
          %p444 = pneg %p288
        $region46: #{tpu_custom_call.1} parent=27 // pred_check_branch
          %446 = sbr.rel (%p444) target = $region48
        $region47: #{tpu_custom_call.1} parent=27 // pred_region
          %v447 = vlaneseq
          %v448 = vshrl.u32 %v447, 7
          %s449 = smul.u32 %s285, 8
          %v450 = vstv %s449
          %v451 = vadd.s32 %v448, %v450
          %vm452 = vcmp.lt.s32.totalorder %v451, 30
          %v453 = vsel %vm452, %v282, 0.0
          %v454 = vsel %vm452, %v283, 0.0
          %v455 = vadd.f32 %v453, 0.0
          %v456 = vadd.f32 %v454, 0.0
          %v457 = vcombine.high %v455, 0.0
          %v459 = vunpack.c.l.s4 1983009808
          %v460 = vunpack.c.0.s8 %v459
          %v461 = vlaneseq
          %v462 = vshrl.u32 %v461, 7
          %v463 = vsub.s32 %v460, %v462
          %v464 = vrot.slane %v455, %v463
          %v466 = vunpack.c.l.s4 1983009808
          %v467 = vunpack.c.0.s8 %v466
          %v468 = vlaneseq
          %v469 = vshrl.u32 %v468, 7
          %v470 = vsub.s32 %v467, %v469
          %v471 = vrot.slane %v457, %v470
          %v472 = vcombine.high %v456, 0.0
          %v474 = vunpack.c.l.s4 1983009808
          %v475 = vunpack.c.0.s8 %v474
          %v476 = vlaneseq
          %v477 = vshrl.u32 %v476, 7
          %v478 = vsub.s32 %v475, %v477
          %v479 = vrot.slane %v456, %v478
          %v481 = vunpack.c.l.s4 1983009808
          %v482 = vunpack.c.0.s8 %v481
          %v483 = vlaneseq
          %v484 = vshrl.u32 %v483, 7
          %v485 = vsub.s32 %v482, %v484
          %v486 = vrot.slane %v472, %v485
          %v487 = vcombine.low %v464, %v479
          %v488 = vcombine.high %v464, %v479
          %v490 = vunpack.c.l.s4 1934713408
          %v491 = vunpack.c.0.s8 %v490
          %v492 = vlaneseq
          %v493 = vshrl.u32 %v492, 7
          %v494 = vsub.s32 %v491, %v493
          %v495 = vrot.slane %v487, %v494
          %v497 = vunpack.c.l.s4 1934713408
          %v498 = vunpack.c.0.s8 %v497
          %v499 = vlaneseq
          %v500 = vshrl.u32 %v499, 7
          %v501 = vsub.s32 %v498, %v500
          %v502 = vrot.slane %v488, %v501
          %v503 = vcombine.low %v471, %v486
          %v504 = vcombine.high %v471, %v486
          %v506 = vunpack.c.l.s4 1934713408
          %v507 = vunpack.c.0.s8 %v506
          %v508 = vlaneseq
          %v509 = vshrl.u32 %v508, 7
          %v510 = vsub.s32 %v507, %v509
          %v511 = vrot.slane %v503, %v510
          %v513 = vunpack.c.l.s4 1934713408
          %v514 = vunpack.c.0.s8 %v513
          %v515 = vlaneseq
          %v516 = vshrl.u32 %v515, 7
          %v517 = vsub.s32 %v514, %v516
          %v518 = vrot.slane %v504, %v517
          %v519 = vcombine.high %v495, 0.0
          %v520 = vcombine.high %v502, 0.0
          %v521 = vcombine.high %v511, 0.0
          %v522 = vcombine.high %v518, 0.0
          %vm523 = vcmask 1041408
          %v524 = vsel %vm523, %v495, 0.0
          %v525 = vrot.slane %v524, 4
          %v526 = vadd.f32 %v524, %v525
          %v527 = vrot.slane %v526, 2
          %v528 = vadd.f32 %v526, %v527
          %v529 = vrot.slane %v528, 1
          %v530 = vadd.f32 %v528, %v529
          %v531 = vsel %vm523, %v519, 0.0
          %v532 = vrot.slane %v531, 4
          %v533 = vadd.f32 %v531, %v532
          %v534 = vrot.slane %v533, 2
          %v535 = vadd.f32 %v533, %v534
          %v536 = vrot.slane %v535, 1
          %v537 = vadd.f32 %v535, %v536
          %v538 = vsel %vm523, %v502, 0.0
          %v539 = vrot.slane %v538, 4
          %v540 = vadd.f32 %v538, %v539
          %v541 = vrot.slane %v540, 2
          %v542 = vadd.f32 %v540, %v541
          %v543 = vrot.slane %v542, 1
          %v544 = vadd.f32 %v542, %v543
          %v545 = vsel %vm523, %v520, 0.0
          %v546 = vrot.slane %v545, 4
          %v547 = vadd.f32 %v545, %v546
          %v548 = vrot.slane %v547, 2
          %v549 = vadd.f32 %v547, %v548
          %v550 = vrot.slane %v549, 1
          %v551 = vadd.f32 %v549, %v550
          %v552 = vsel %vm523, %v511, 0.0
          %v553 = vrot.slane %v552, 4
          %v554 = vadd.f32 %v552, %v553
          %v555 = vrot.slane %v554, 2
          %v556 = vadd.f32 %v554, %v555
          %v557 = vrot.slane %v556, 1
          %v558 = vadd.f32 %v556, %v557
          %v559 = vsel %vm523, %v521, 0.0
          %v560 = vrot.slane %v559, 4
          %v561 = vadd.f32 %v559, %v560
          %v562 = vrot.slane %v561, 2
          %v563 = vadd.f32 %v561, %v562
          %v564 = vrot.slane %v563, 1
          %v565 = vadd.f32 %v563, %v564
          %v566 = vsel %vm523, %v518, 0.0
          %v567 = vrot.slane %v566, 4
          %v568 = vadd.f32 %v566, %v567
          %v569 = vrot.slane %v568, 2
          %v570 = vadd.f32 %v568, %v569
          %v571 = vrot.slane %v570, 1
          %v572 = vadd.f32 %v570, %v571
          %v573 = vsel %vm523, %v522, 0.0
          %v574 = vrot.slane %v573, 4
          %v575 = vadd.f32 %v573, %v574
          %v576 = vrot.slane %v575, 2
          %v577 = vadd.f32 %v575, %v576
          %v578 = vrot.slane %v577, 1
          %v579 = vadd.f32 %v577, %v578
          %v580 = vld [vmem:[%s248] sm:$0xff]
          %vm589 = vcmask 1041409
          %v590 = vsel %vm589, %v537, %v530
          %vm591 = vcmask 1042434
          %v592 = vsel %vm591, %v544, %v590
          %vm593 = vcmask 1043459
          %v594 = vsel %vm593, %v551, %v592
          %vm595 = vcmask 1044484
          %v596 = vsel %vm595, %v558, %v594
          %vm597 = vcmask 1045509
          %v598 = vsel %vm597, %v565, %v596
          %vm599 = vcmask 1046534
          %v600 = vsel %vm599, %v572, %v598
          %vm601 = vcmask 1047559
          %v602 = vsel %vm601, %v579, %v600
          %v604 = vadd.f32 %v580, %v602
          %605 = vst [vmem:[%s248] sm:$0xff] %v604
        $region48: #{tpu_custom_call.1} parent=27 // pred_fallthru
          _
        %s606 = sand.u32 %s121, 1
        %s607 = scalar_lea.sflag [#allocation4], %s606
        %s608 = sand.u32 %s121, 1
        %s609 = smul.addr %s608, 8
        %s610 = scalar_lea.vmem [#allocation7], %s609
        // Predicated region
        $region49: #{tpu_custom_call.1} parent=27 // pred_check
          %p611 = pneg %p131
        $region50: #{tpu_custom_call.1} parent=27 // pred_check_branch
          %613 = sbr.rel (%p611) target = $region52
        $region51: #{tpu_custom_call.1} parent=27 // pred_region
          %s615 = ssub.s32 128, 128
          %616 = vsyncadd %s607, %s615
          %s617 = smul.addr %s27, 128
          %s618 = scalar_lea.hbm %s2, %s617
          %s620 = sshll.u32 %s610, 4
          %s621 = int_to_ptr.vmem [resolvable:$true] %s620
          %623 = dma.vmem_to_hbm [thread:$0]  %s621, 128, %s618, %s607
        $region52: #{tpu_custom_call.1} parent=27 // pred_fallthru
          _
      $region28: #{tpu_custom_call.1} parent=5 // pred_fallthru
        _
      %p624 = scmp.le.s32.totalorder 2, %s17
      // Predicated region
      $region53: #{tpu_custom_call.1} parent=5 // pred_check
        %p625 = pneg %p624
      $region54: #{tpu_custom_call.1} parent=5 // pred_check_branch
        %627 = sbr.rel (%p625) target = $region56
      $region55: #{tpu_custom_call.1} parent=5 // pred_region
        %s628 = ssub.s32 %s17, 2
        // Predicated region
        $region57: #{tpu_custom_call.1} parent=55 // pred_check
          %p629 = pneg %p137
        $region58: #{tpu_custom_call.1} parent=55 // pred_check_branch
          %631 = sbr.rel (%p629) target = $region60
        $region59: #{tpu_custom_call.1} parent=55 // pred_region
          %s632 = sand.u32 %s122, 1
          %s633 = scalar_lea.sflag [#allocation4], %s632
          %s634 = sand.u32 %s122, 1
          %s635 = smul.addr %s634, 8
          %s636 = scalar_lea.vmem [#allocation7], %s635
          %637 = dma.done %s633, 128
        $region60: #{tpu_custom_call.1} parent=55 // pred_fallthru
          _
      $region56: #{tpu_custom_call.1} parent=5 // pred_fallthru
        _
    $region6: #{tpu_custom_call.1} parent=1 // loop_footer
      %s21 = sadd.s32 1, %s17
    $region7: #{tpu_custom_call.1} parent=1 // loop_footer_branch
      %16 = sbr.rel target = $region3
    $region8: #{tpu_custom_call.1} parent=1 // loop_exit
      _
    %638 = vsyncpa [#allocation3], 1
    %s639 = scalar_lea.sflag [#allocation3], 1
    %640 = vsyncpa %s639, 1
    %641 = vsyncpa [#allocation6], 1
    %s642 = scalar_lea.sflag [#allocation6], 1
    %643 = vsyncpa %s642, 1
    %644 = vsyncpa [#allocation4], 1
    %s645 = scalar_lea.sflag [#allocation4], 1
    %646 = vsyncpa %s645, 1

</llo_original>
